<compile_context>
chip_gen: v5e
topology: v5e:2x2
jax: 0.10.0
libtpu: 0.0.40
codegen_flags: <defaults>
</compile_context>

<pallas_src>
import jax
import jax.numpy as jnp
from jax.experimental import pallas as pl
from jax.experimental.pallas import tpu as pltpu


def cls_head_prob_kernel(last_ref, w_ref, b_ref, prob_ref):
    # dropout is identity in eval/inference mode
    # TODO(synk): training-mode dropout (pltpu PRNG masking) intentionally not emitted.
    logits = jnp.dot(last_ref[...], w_ref[...],
                     preferred_element_type=jnp.float32) + b_ref[...]   # [B, C] f32
    m = jnp.max(logits, axis=-1, keepdims=True)
    e = jnp.exp(logits - m)
    denom = jnp.sum(e, axis=-1, keepdims=True)
    prob_ref[...] = (e / denom).astype(prob_ref.dtype)


def cls_head_loss_kernel(last_ref, w_ref, b_ref, labels_ref, prob_ref, loss_ref):
    B = last_ref.shape[0]

    logits = jnp.dot(last_ref[...], w_ref[...],
                     preferred_element_type=jnp.float32) + b_ref[...]   # [B, C] f32

    # softmax(dim=-1)
    m = jnp.max(logits, axis=-1, keepdims=True)                 # [B, 1]
    e = jnp.exp(logits - m)                                     # [B, C]
    denom = jnp.sum(e, axis=-1, keepdims=True)                  # [B, 1]
    prob_ref[...] = (e / denom).astype(prob_ref.dtype)

    # CrossEntropyLoss (mean reduction).  With C == 2 the label pick is a lane select,
    # no one-hot multiply / cross-lane reduce needed.
    lse = m + jnp.log(denom)                                    # [B, 1] logsumexp
    picked = jnp.where(labels_ref[...] == 0,
                       logits[:, 0:1], logits[:, 1:2])          # [B, 1]
    loss_ref[...] = jnp.sum(lse - picked, axis=0, keepdims=True) * (1.0 / B)  # (1, 1)


def classifier_head(hidden_states, w, b, labels=None):
    """hidden_states: [B, S, H] (bf16 encoder output), w: [H, C] f32, b: [C] f32,
    labels: [B] int32 or None.  Returns prob, or (loss, prob) when labels given."""
    B, S, H = hidden_states.shape
    C = w.shape[1]

    # Only the last token is used by the head: slice in the wrapper so just [B, H]
    # (bf16) flows into the kernel instead of the full [B, S, H] tensor.
    last = hidden_states[:, -1, :]                  # [B, H], stays bf16
    w_bf = w.astype(jnp.bfloat16)                   # MXU bf16 x bf16 -> f32 acc
    b2 = b.reshape(1, C).astype(jnp.float32)

    vmem = pl.BlockSpec(memory_space=pltpu.MemorySpace.VMEM)

    if labels is None:
        prob = pl.pallas_call(
            cls_head_prob_kernel,
            out_shape=jax.ShapeDtypeStruct((B, C), jnp.float32),
            in_specs=[vmem, vmem, vmem],
            out_specs=vmem,
        )(last, w_bf, b2)
        return prob

    prob, loss = pl.pallas_call(
        cls_head_loss_kernel,
        out_shape=(
            jax.ShapeDtypeStruct((B, C), jnp.float32),   # prob
            jax.ShapeDtypeStruct((1, 1), jnp.float32),   # loss (VMEM scalar tile)
        ),
        in_specs=[vmem, vmem, vmem, vmem],
        out_specs=(vmem, vmem),
    )(last, w_bf, b2, labels.reshape(B, 1).astype(jnp.int32))
    return loss[0, 0], prob


def _reference(hidden_states, w, b, labels):
    # Same bf16-rounded operands, f32 math — matches kernel numerics.
    last = hidden_states[:, -1, :].astype(jnp.float32)
    wf = w.astype(jnp.bfloat16).astype(jnp.float32)
    logits = last @ wf + b
    prob = jax.nn.softmax(logits, axis=-1)
    logp = jax.nn.log_softmax(logits, axis=-1)
    loss = -jnp.mean(jnp.take_along_axis(logp, labels[:, None], axis=-1))
    return loss, prob


if __name__ == "__main__":
    B, S, H, C = 2, 8, 32, 2  # batch, seq len, encoder hidden size, num classes

    key = jax.random.PRNGKey(0)
    k_h, k_w, k_b = jax.random.split(key, 3)

    # synthetic encoder output hidden_states (stand-in for outputs.hidden_states[-1]),
    # kept in the encoder-native bf16
    hidden_states = jax.random.normal(k_h, (B, S, H), dtype=jnp.float32).astype(jnp.bfloat16)

    # nn.Linear(H, 2) deterministic init: U(-1/sqrt(H), 1/sqrt(H)), stored transposed as [H, C]
    bound = 1.0 / (H ** 0.5)
    w = jax.random.uniform(k_w, (H, C), minval=-bound, maxval=bound, dtype=jnp.float32)
    b = jax.random.uniform(k_b, (C,), minval=-bound, maxval=bound, dtype=jnp.float32)

    labels = jnp.array([0, 1], dtype=jnp.int32)

    # labels-given path: (loss, prob)
    loss, prob = jax.jit(classifier_head)(hidden_states, w, b, labels)
    # labels=None path: prob only (skips the CE tail, as in the PyTorch module)
    prob_only = jax.jit(classifier_head)(hidden_states, w, b)
    jax.block_until_ready((loss, prob, prob_only))

    ref_loss, ref_prob = _reference(hidden_states, w, b, labels)
    assert jnp.allclose(prob, ref_prob, atol=1e-4), (prob, ref_prob)
    assert jnp.allclose(prob_only, ref_prob, atol=1e-4), (prob_only, ref_prob)
    assert jnp.allclose(loss, ref_loss, atol=1e-4), (loss, ref_loss)

    print("KERNEL_OK")
</pallas_src>

<mosaic_0001>
module attributes {stable_mosaic.version = 11 : i64} {
  func.func @cls_head_loss_kernel(%arg0: memref<2x32xbf16, #tpu.memory_space<vmem>>, %arg1: memref<32x2xbf16, #tpu.memory_space<vmem>>, %arg2: memref<1x2xf32, #tpu.memory_space<vmem>>, %arg3: memref<2x1xi32, #tpu.memory_space<vmem>>, %arg4: memref<2x2xf32, #tpu.memory_space<vmem>>, %arg5: memref<1x1xf32, #tpu.memory_space<vmem>>) attributes {dimension_semantics = [], scalar_prefetch = 0 : i64, scratch_operands = 0 : i64, tpu.core_type = #tpu.core_type<tc>} {
    %c0 = arith.constant 0 : index
    %c0_0 = arith.constant 0 : index
    %0 = vector.load %arg0[%c0, %c0_0] : memref<2x32xbf16, #tpu.memory_space<vmem>>, vector<2x32xbf16>
    %c0_1 = arith.constant 0 : index
    %c0_2 = arith.constant 0 : index
    %1 = vector.load %arg1[%c0_1, %c0_2] : memref<32x2xbf16, #tpu.memory_space<vmem>>, vector<32x2xbf16>
    %cst = arith.constant dense<0.000000e+00> : vector<2x2xf32>
    %2 = tpu.matmul %0, %1, %cst {dimension_numbers = #tpu.dot_dimension_numbers<[1], [0], [0], [1], [0, 0, 1, 1], [], []>} : vector<2x32xbf16>, vector<32x2xbf16>, vector<2x2xf32> -> vector<2x2xf32>
    %c0_3 = arith.constant 0 : index
    %c0_4 = arith.constant 0 : index
    %3 = vector.load %arg2[%c0_3, %c0_4] : memref<1x2xf32, #tpu.memory_space<vmem>>, vector<1x2xf32>
    %4 = vector.broadcast %3 : vector<1x2xf32> to vector<2x2xf32>
    %5 = arith.addf %2, %4 : vector<2x2xf32>
    %cst_5 = arith.constant dense<0xFF800000> : vector<2xf32>
    %6 = vector.multi_reduction <maximumf>, %5, %cst_5 [1] : vector<2x2xf32> to vector<2xf32>
    %7 = vector.shape_cast %6 : vector<2xf32> to vector<2x1xf32>
    %8 = vector.broadcast %7 : vector<2x1xf32> to vector<2x2xf32>
    %9 = arith.subf %5, %8 : vector<2x2xf32>
    %10 = math.exp %9 : vector<2x2xf32>
    %cst_6 = arith.constant dense<0.000000e+00> : vector<2xf32>
    %11 = vector.multi_reduction <add>, %10, %cst_6 [1] : vector<2x2xf32> to vector<2xf32>
    %12 = vector.shape_cast %11 : vector<2xf32> to vector<2x1xf32>
    %13 = vector.broadcast %12 : vector<2x1xf32> to vector<2x2xf32>
    %14 = arith.divf %10, %13 : vector<2x2xf32>
    %c0_7 = arith.constant 0 : index
    %c0_8 = arith.constant 0 : index
    %15 = vector.load %arg4[%c0_7, %c0_8] : memref<2x2xf32, #tpu.memory_space<vmem>>, vector<2x2xf32>
    tpu.vector_store %arg4[%c0_7, %c0_8], %14 {strides = array<i32>} : memref<2x2xf32, #tpu.memory_space<vmem>>, vector<2x2xf32>,
    %16 = math.log %12 : vector<2x1xf32>
    %17 = arith.addf %7, %16 : vector<2x1xf32>
    %c0_9 = arith.constant 0 : index
    %c0_10 = arith.constant 0 : index
    %18 = vector.load %arg3[%c0_9, %c0_10] : memref<2x1xi32, #tpu.memory_space<vmem>>, vector<2x1xi32>
    %c0_i32 = arith.constant 0 : i32
    %19 = vector.broadcast %c0_i32 : i32 to vector<2x1xi32>
    %20 = arith.cmpi eq, %18, %19 : vector<2x1xi32>
    %21 = vector.extract_strided_slice %5 {offsets = [0, 0], sizes = [2, 1], strides = [1, 1]} : vector<2x2xf32> to vector<2x1xf32>
    %22 = vector.extract_strided_slice %5 {offsets = [0, 1], sizes = [2, 1], strides = [1, 1]} : vector<2x2xf32> to vector<2x1xf32>
    %23 = arith.select %20, %21, %22 : vector<2x1xi1>, vector<2x1xf32>
    %24 = arith.subf %17, %23 : vector<2x1xf32>
    %cst_11 = arith.constant dense<0.000000e+00> : vector<1xf32>
    %25 = vector.multi_reduction <add>, %24, %cst_11 [0] : vector<2x1xf32> to vector<1xf32>
    %26 = vector.shape_cast %25 : vector<1xf32> to vector<1x1xf32>
    %cst_12 = arith.constant 5.000000e-01 : f32
    %27 = vector.broadcast %cst_12 : f32 to vector<1x1xf32>
    %28 = arith.mulf %26, %27 : vector<1x1xf32>
    %c0_13 = arith.constant 0 : index
    %c0_14 = arith.constant 0 : index
    %29 = vector.load %arg5[%c0_13, %c0_14] : memref<1x1xf32, #tpu.memory_space<vmem>>, vector<1x1xf32>
    tpu.vector_store %arg5[%c0_13, %c0_14], %28 {strides = array<i32>} : memref<1x1xf32, #tpu.memory_space<vmem>>, vector<1x1xf32>,
    return
  }
}

</mosaic_0001>

<llo_original>
// kernel: classifier_head.1
$region0: #{classifier_head.1}
  #allocation0 [shape = 'u32[]', space=smem, size = 0x4, offset = 0x4, fixed_abs, tag = 'smem constant byte address 0x4 - core index']
  #allocation1 [shape = 'u32[72,128]{1,0:T(1,128)}', space=vmem, size = 0x9000, scoped, tag = 'internal scratch']
  %s0 = inlined_call_operand.vmem [shape: bf16[2,32], index: 0, kind: input, shape index: {}]
  %s1 = inlined_call_operand.vmem [shape: bf16[32,2], index: 1, kind: input, shape index: {}]
  %s2 = inlined_call_operand.vmem [shape: f32[1,2], index: 2, kind: input, shape index: {}]
  %s3 = inlined_call_operand.vmem [shape: s32[2,1], index: 3, kind: input, shape index: {}]
  %s4 = inlined_call_operand.hbm [shape: f32[2,2], index: 4, kind: output, shape index: {0}]
  %s5 = inlined_call_operand.hbm [shape: f32[1,1], index: 5, kind: output, shape index: {1}]
  %6 = xla_tuple %s4, %s5
  %s7 = sld [smem:[#allocation0]]
  $region34: #{classifier_head.1} parent=0
    _
  %s9 = ssub.s32 1, %s7
  %s10 = scalar_select 0, %s9, %s7
  $region1: #{classifier_head.1} parent=0
    #allocation2 [shape = 'u8[1024]{0}', space=vmem, size = 0x400, scoped, tag = 'output window, operand 0, single buffered']
    #allocation3 [shape = 's32[1]{0}', space=sflag, size = 0x4, scoped, tag = 'scoped memory for classifier_head.1']
    #allocation4 [shape = 'u8[512]{0}', space=vmem, size = 0x400, scoped, tag = 'output window, operand 1, single buffered']
    #allocation5 [shape = 's32[1]{0}', space=sflag, size = 0x4, scoped, tag = 'scoped memory for classifier_head.1']
    %11 = vsyncpa [#allocation3], 0
    %12 = vsyncpa [#allocation5], 0
    // Predicated region
    $region2: #{classifier_head.1} parent=1 // pred_check
      _
    $region3: #{classifier_head.1} parent=1 // pred_check_branch
      %14 = sbr.rel (0) target = $region5
    $region4: #{classifier_head.1} parent=1 // pred_region
      _
    $region5: #{classifier_head.1} parent=1 // pred_fallthru
      _
    // Predicated region
    $region6: #{classifier_head.1} parent=1 // pred_check
      _
    $region7: #{classifier_head.1} parent=1 // pred_check_branch
      %16 = sbr.rel (0) target = $region9
    $region8: #{classifier_head.1} parent=1 // pred_region
      _
    $region9: #{classifier_head.1} parent=1 // pred_fallthru
      _
    // Predicated region
    $region10: #{classifier_head.1} parent=1 // pred_check
      _
    $region11: #{classifier_head.1} parent=1 // pred_check_branch
      %18 = sbr.rel (0) target = $region13
    $region12: #{classifier_head.1} parent=1 // pred_region
      _
    $region13: #{classifier_head.1} parent=1 // pred_fallthru
      _
    // Predicated region
    $region14: #{classifier_head.1} parent=1 // pred_check
      _
    $region15: #{classifier_head.1} parent=1 // pred_check_branch
      %20 = sbr.rel (0) target = $region17
    $region16: #{classifier_head.1} parent=1 // pred_region
      _
    $region17: #{classifier_head.1} parent=1 // pred_fallthru
      _
    %v22 = vld [vmem:[%s0] sm:$0x1]
    %v23 = vld [vmem:[%s1] sm:$0xf]
    %v24 = vld [vmem:[%s1 + $0x4] sm:$0xf]
    %v25 = vld [vmem:[%s1 + $0x8] sm:$0xf]
    %v26 = vld [vmem:[%s1 + $0xc] sm:$0xf]
    %v27 = vld [vmem:[%s2] sm:$0x1]
    %v29 = vperm.slane %v27, 0
    %v35 = vunpack.c.l.b16 %v23
    %v36 = vunpack.c.l.b16 %v24
    %v37 = vunpack.c.l.b16 %v25
    %v38 = vunpack.c.l.b16 %v26
    %v39 = vpack.c.b16 %v36, %v35
    %v40 = vpack.c.b16 %v38, %v37
    %vm43 = vcmask 261120
    %v45 = vsel %vm43, %v22, 0
    %47 = vmatpush.bf16.msra.mxu0 0
    %48 = vmatpush.bf16.msra.mxu0 0
    %49 = vmatpush.bf16.msra.mxu0 0
    %50 = vmatpush.bf16.msra.mxu0 0
    %51 = vmatpush.bf16.msra.mxu0 0
    %52 = vmatpush.bf16.msra.mxu0 0
    %53 = vmatpush.bf16.msra.mxu0 %v40
    %54 = vmatpush.bf16.msra.mxu0 %v39
    %55 = vmatmul.bf16.gmra.mxu0 %v45
    %v56 = vpop.f32.mrf.mxu0
    %v57 = vadd.f32 %v29, %v56
    %v58 = vpop.f32.mrf.mxu0
    %59 = vdwg.mxu0
    %vm60 = vcmask 9216
    %v61 = vsel %vm60, %v57, -inf
    %62 = vmax.xlane.f32.xlu0 %v61
    %v63 = vpop.xlane.xlu0 %62
    %v64 = vsub.f32 %v57, %v63
    %v65 = vmul.f32 %v64, 1.442695
    %v66 = vpow.pop %v65
    %v67 = vsel %vm60, %v66, 0.0
    %68 = vadd.xlane.f32.xlu0 %v67
    %v69 = vpop.xlane.xlu0 %68
    %v70 = vrcp.pop %v69
    %v71 = vmul.f32 %v69, %v70
    %v72 = vsub.f32 1.0, %v71
    %v73 = vmul.f32 %v70, %v72
    %v74 = vadd.f32 %v70, %v73
    %vm75 = vweird.f32 %v69
    %vm76 = vweird.f32 %v70
    %vm77 = vmor %vm75, %vm76
    %v78 = vsel %vm77, %v70, %v74
    %v79 = vand.u32 2147483647, %v69
    %vm80 = vcmp.eq.f32.partialorder %v79, 8.507059e+37
    %v81 = vand.u32 %v69, 2147483648
    %v82 = vor.u32 1.1754944e-38, %v81
    %v83 = vsel %vm80, %v82, %v78
    %v84 = vmul.f32 %v66, %v83
    %85 = vst.msk [vmem:[#allocation2] sm:$0x3] %vm60, %v84
    %v86 = vlog2.pop %v69
    %v87 = vmul.f32 %v86, 0.6931472
    %v88 = vadd.f32 %v63, %v87
    %v89 = vld [vmem:[%s3] sm:$0x3]
    %vm90 = vcmp.eq.s32.totalorder %v89, 0
    %92 = vrot.lane.b32.xlu0 %v57, 127
    %v93 = vpop.permute.xlu0 %92
    %v95 = vsel %vm90, %v57, %v93
    %v96 = vsub.f32 %v88, %v95
    %vm97 = vcmask 1024
    %v98 = vsel %vm97, %v96, 0.0
    %v99 = vrot.slane %v98, 4
    %v100 = vadd.f32 %v98, %v99
    %v101 = vrot.slane %v100, 2
    %v102 = vadd.f32 %v100, %v101
    %v103 = vrot.slane %v102, 1
    %v104 = vadd.f32 %v102, %v103
    %v105 = vmul.f32 %v104, 0.5
    %vm106 = vcmask 0
    %107 = vst.msk [vmem:[#allocation4] sm:$0x1] %vm106, %v105
    // Predicated region
    $region18: #{classifier_head.1} parent=1 // pred_check
      _
    $region19: #{classifier_head.1} parent=1 // pred_check_branch
      %109 = sbr.rel (0) target = $region21
    $region20: #{classifier_head.1} parent=1 // pred_region
      %111 = vsyncadd [#allocation3], 0
      %s113 = sshll.u32 [#allocation2], 4
      %s114 = int_to_ptr.vmem [resolvable:$true] %s113
      %s115 = sshll.u32 %s4, 4
      %s116 = int_to_ptr.hbm [resolvable:$true] %s115
      %118 = dma.vmem_to_hbm [thread:$0]  %s114, 32, %s116, [#allocation3]
    $region21: #{classifier_head.1} parent=1 // pred_fallthru
      _
    // Predicated region
    $region22: #{classifier_head.1} parent=1 // pred_check
      _
    $region23: #{classifier_head.1} parent=1 // pred_check_branch
      %120 = sbr.rel (0) target = $region25
    $region24: #{classifier_head.1} parent=1 // pred_region
      %122 = vsyncadd [#allocation5], 0
      %s124 = sshll.u32 [#allocation4], 4
      %s125 = int_to_ptr.vmem [resolvable:$true] %s124
      %s126 = sshll.u32 %s5, 4
      %s127 = int_to_ptr.hbm [resolvable:$true] %s126
      %129 = dma.vmem_to_hbm [thread:$0]  %s125, 16, %s127, [#allocation5]
    $region25: #{classifier_head.1} parent=1 // pred_fallthru
      _
    // Predicated region
    $region26: #{classifier_head.1} parent=1 // pred_check
      _
    $region27: #{classifier_head.1} parent=1 // pred_check_branch
      %131 = sbr.rel (0) target = $region29
    $region28: #{classifier_head.1} parent=1 // pred_region
      %133 = dma.done [#allocation3], 32
    $region29: #{classifier_head.1} parent=1 // pred_fallthru
      _
    // Predicated region
    $region30: #{classifier_head.1} parent=1 // pred_check
      _
    $region31: #{classifier_head.1} parent=1 // pred_check_branch
      %135 = sbr.rel (0) target = $region33
    $region32: #{classifier_head.1} parent=1 // pred_region
      %137 = dma.done [#allocation5], 16
    $region33: #{classifier_head.1} parent=1 // pred_fallthru
      _
    %138 = vsyncpa [#allocation3], 1
    %139 = vsyncpa [#allocation5], 1

</llo_original>
